<compile_context>
chip_gen: v7x
topology: tpu7x:2x2x1
jax: 0.10.0
libtpu: 0.0.40
codegen_flags: <defaults>
</compile_context>

<pallas_src>
import jax
import jax.numpy as jnp
from jax import lax
from jax.experimental import pallas as pl
from jax.experimental.pallas import tpu as pltpu

ALPHA = 1.0
GAMMA = 2.0            # == 2 -> explicit square in the kernel
LABEL_SMOOTHING = 0.1

_NEG = -1e30           # pad value for padded class lanes
_LANE = 128
_SUBLANE = 8
_NUM_CORE_SPLITS = 2   # leading "parallel" grid axis (v7x megacore); harmless on 1-TC chips


def _round_up(x, m):
    return ((x + m - 1) // m) * m


def _make_focal_kernel(*, n_true, c_true, c_pad, tile_n, tiles_per_core):
    inv_c = 1.0 / float(c_true)

    def kernel(x_ref, t_ref, o_ref):
        core = pl.program_id(0)
        step = pl.program_id(1)

        @pl.when(step == 0)
        def _init():
            o_ref[...] = jnp.zeros_like(o_ref)

        x = x_ref[...].astype(jnp.float32)            # (tile_n, c_pad)
        t = t_ref[...]                                # (tile_n, 1) int32
        tn = x.shape[0]

        class_ids = lax.broadcasted_iota(jnp.int32, (tn, c_pad), 1)

        # numerically-stable LSE; padded lanes (= -1e30) contribute exp(...) == 0
        row_max = jnp.max(x, axis=-1, keepdims=True)
        shifted = x - row_max
        lse = jnp.log(jnp.sum(jnp.exp(shifted), axis=-1, keepdims=True))

        # do NOT materialize log_probs = shifted - lse
        tgt_shifted = jnp.sum(jnp.where(class_ids == t, shifted, 0.0),
                              axis=-1, keepdims=True)
        if c_pad == c_true:
            sum_shifted = jnp.sum(shifted, axis=-1, keepdims=True)
        else:
            sum_shifted = jnp.sum(jnp.where(class_ids < c_true, shifted, 0.0),
                                  axis=-1, keepdims=True)

        nll = lse - tgt_shifted                       # -log p[target]
        smooth = lse - sum_shifted * inv_c            # mean_c(-log p)
        ce = (1.0 - LABEL_SMOOTHING) * nll + LABEL_SMOOTHING * smooth

        pt = jnp.exp(-ce)
        q = 1.0 - pt
        focal = ALPHA * (q * q) * ce                  # gamma == 2 -> two VPU muls

        # mask rows past the true batch size (batch padding)
        row_start = (core * tiles_per_core + step) * tile_n
        row_ids = row_start + lax.broadcasted_iota(jnp.int32, (tn, 1), 0)
        focal = jnp.where(row_ids < n_true, focal, 0.0)

        # accumulate this tile's partial sum into the resident output block
        o_ref[...] += jnp.sum(focal)

    return kernel


def focal_loss(inputs, targets, *, tile_n=None):
    """inputs: (N, C) float logits (f32 or bf16); targets: (N,) int class indices."""
    n, c = inputs.shape
    c_pad = _round_up(c, _LANE)
    itemsize = jnp.dtype(inputs.dtype).itemsize

    if tile_n is None:
        # keep the double-buffered logits block around <= ~8 MiB (safe on v5e/v7x)
        budget = 8 * 1024 * 1024
        max_rows = max(_SUBLANE, budget // (2 * c_pad * itemsize))
        tile_n = min(512, max_rows, _round_up(n, _SUBLANE))
        tile_n = max(_SUBLANE, (tile_n // _SUBLANE) * _SUBLANE)
    assert tile_n % _SUBLANE == 0

    tiles_total = (n + tile_n - 1) // tile_n
    tiles_per_core = (tiles_total + _NUM_CORE_SPLITS - 1) // _NUM_CORE_SPLITS
    n_pad = _NUM_CORE_SPLITS * tiles_per_core * tile_n

    x = inputs
    if c_pad != c:
        x = jnp.pad(x, ((0, 0), (0, c_pad - c)), constant_values=_NEG)
    if n_pad != n:
        x = jnp.pad(x, ((0, n_pad - n), (0, 0)))
    t2d = targets.astype(jnp.int32).reshape(n, 1)
    if n_pad != n:
        t2d = jnp.pad(t2d, ((0, n_pad - n), (0, 0)))

    # explicit scoped-VMEM budget: double-buffered tiles + output + headroom
    est = 2 * tile_n * c_pad * itemsize      # logits (double-buffered)
    est += 2 * tile_n * _LANE * 4            # targets (lane-padded in VMEM)
    est += 2 * _SUBLANE * _LANE * 4          # resident output block
    vmem_bytes = min(max(2 * est + (8 << 20), 32 << 20), 48 << 20)

    kernel = _make_focal_kernel(n_true=n, c_true=c, c_pad=c_pad,
                                tile_n=tile_n, tiles_per_core=tiles_per_core)

    out = pl.pallas_call(
        kernel,
        out_shape=jax.ShapeDtypeStruct((_NUM_CORE_SPLITS * _SUBLANE, _LANE), jnp.float32),
        grid=(_NUM_CORE_SPLITS, tiles_per_core),
        in_specs=[
            pl.BlockSpec((tile_n, c_pad), lambda core, i: (core * tiles_per_core + i, 0)),
            pl.BlockSpec((tile_n, 1), lambda core, i: (core * tiles_per_core + i, 0)),
        ],
        out_specs=pl.BlockSpec((_SUBLANE, _LANE), lambda core, i: (core, 0)),
        compiler_params=pltpu.CompilerParams(
            dimension_semantics=("parallel", "arbitrary"),
            vmem_limit_bytes=vmem_bytes,
        ),
    )(x, t2d)

    # every element of a core's (8,128) output block holds that core's partial sum
    partials = out[::_SUBLANE, 0]                    # (NUM_CORE_SPLITS,)
    return jnp.sum(partials) / jnp.float32(n)


def focal_loss_ref(inputs, targets):
    # pure-JAX reference (matches PyTorch F.cross_entropy w/ label smoothing + focal)
    x = inputs.astype(jnp.float32)
    log_probs = jax.nn.log_softmax(x, axis=-1)
    n, _ = x.shape
    nll = -log_probs[jnp.arange(n), targets]
    smooth = -jnp.mean(log_probs, axis=-1)
    ce = (1.0 - LABEL_SMOOTHING) * nll + LABEL_SMOOTHING * smooth
    pt = jnp.exp(-ce)
    return jnp.mean(ALPHA * (1.0 - pt) ** GAMMA * ce)


if __name__ == "__main__":
    key = jax.random.PRNGKey(0)

    # 1) base toy shape from the module
    k1, k2 = jax.random.split(key)
    N, C = 8, 32
    logits = jax.random.normal(k1, (N, C), dtype=jnp.float32) * 2.0
    targets = jax.random.randint(k2, (N,), 0, C, dtype=jnp.int32)
    loss = focal_loss(logits, targets)
    jax.block_until_ready(loss)
    ref = focal_loss_ref(logits, targets)
    assert jnp.allclose(loss, ref, atol=1e-5, rtol=1e-5), (loss, ref)

    # 2) non-aligned N / C + multiple tiles (exercises row + lane masking)
    k3, k4 = jax.random.split(k2)
    N2, C2 = 37, 75
    logits2 = jax.random.normal(k3, (N2, C2), dtype=jnp.float32) * 3.0
    targets2 = jax.random.randint(k4, (N2,), 0, C2, dtype=jnp.int32)
    loss2 = focal_loss(logits2, targets2, tile_n=16)
    jax.block_until_ready(loss2)
    ref2 = focal_loss_ref(logits2, targets2)
    assert jnp.allclose(loss2, ref2, atol=1e-5, rtol=1e-5), (loss2, ref2)

    # 3) bf16 logits (halved HBM bytes; upcast in-register, f32 reduction)
    N3, C3 = 24, 64
    logits3 = (jax.random.normal(k3, (N3, C3), dtype=jnp.float32) * 2.0).astype(jnp.bfloat16)
    targets3 = jax.random.randint(k4, (N3,), 0, C3, dtype=jnp.int32)
    loss3 = focal_loss(logits3, targets3, tile_n=8)
    jax.block_until_ready(loss3)
    ref3 = focal_loss_ref(logits3.astype(jnp.float32), targets3)
    assert jnp.allclose(loss3, ref3, atol=1e-4, rtol=1e-4), (loss3, ref3)

    print("KERNEL_OK")
</pallas_src>

<mosaic_0001>
module attributes {stable_mosaic.version = 11 : i64} {
  func.func @kernel(%arg0: i32, %arg1: i32, %arg2: memref<8x128xf32, #tpu.memory_space<vmem>>, %arg3: memref<8x1xi32, #tpu.memory_space<vmem>>, %arg4: memref<8x128xf32, #tpu.memory_space<vmem>>) attributes {dimension_semantics = [#tpu.dimension_semantics<parallel>, #tpu.dimension_semantics<arbitrary>], iteration_bounds = array<i64: 2, 1>, scalar_prefetch = 0 : i64, scratch_operands = 0 : i64, tpu.core_type = #tpu.core_type<tc>, window_params = [{transform_indices = @transform_0, window_bounds = array<i64: 8, 128>}, {transform_indices = @transform_1, window_bounds = array<i64: 8, 1>}, {transform_indices = @transform_2, window_bounds = array<i64: 8, 128>}]} {
    %c0_i32 = arith.constant 0 : i32
    %0 = arith.cmpi eq, %arg1, %c0_i32 : i32
    %1 = arith.extui %0 : i1 to i32
    %c0_i32_0 = arith.constant 0 : i32
    %2 = arith.cmpi ne, %1, %c0_i32_0 : i32
    scf.if %2 {
      %cst_22 = arith.constant 0.000000e+00 : f32
      %62 = vector.broadcast %cst_22 : f32 to vector<8x128xf32>
      %c0_23 = arith.constant 0 : index
      %c0_24 = arith.constant 0 : index
      %63 = vector.load %arg4[%c0_23, %c0_24] : memref<8x128xf32, #tpu.memory_space<vmem>>, vector<8x128xf32>
      tpu.vector_store %arg4[%c0_23, %c0_24], %62 {strides = array<i32>} : memref<8x128xf32, #tpu.memory_space<vmem>>, vector<8x128xf32>,
    } else {
    }
    %c0 = arith.constant 0 : index
    %c0_1 = arith.constant 0 : index
    %3 = vector.load %arg2[%c0, %c0_1] : memref<8x128xf32, #tpu.memory_space<vmem>>, vector<8x128xf32>
    %c0_2 = arith.constant 0 : index
    %c0_3 = arith.constant 0 : index
    %4 = vector.load %arg3[%c0_2, %c0_3] : memref<8x1xi32, #tpu.memory_space<vmem>>, vector<8x1xi32>
    %5 = tpu.iota {dimensions = array<i32: 1>} : vector<8x128xi32>
    %cst = arith.constant dense<0xFF800000> : vector<8xf32>
    %6 = vector.multi_reduction <maximumf>, %3, %cst [1] : vector<8x128xf32> to vector<8xf32>
    %7 = vector.shape_cast %6 : vector<8xf32> to vector<8x1xf32>
    %8 = vector.broadcast %7 : vector<8x1xf32> to vector<8x128xf32>
    %9 = arith.subf %3, %8 : vector<8x128xf32>
    %10 = math.exp %9 : vector<8x128xf32>
    %cst_4 = arith.constant dense<0.000000e+00> : vector<8xf32>
    %11 = vector.multi_reduction <add>, %10, %cst_4 [1] : vector<8x128xf32> to vector<8xf32>
    %12 = vector.shape_cast %11 : vector<8xf32> to vector<8x1xf32>
    %13 = math.log %12 : vector<8x1xf32>
    %14 = vector.broadcast %4 : vector<8x1xi32> to vector<8x128xi32>
    %15 = arith.cmpi eq, %5, %14 : vector<8x128xi32>
    %cst_5 = arith.constant 0.000000e+00 : f32
    %16 = vector.broadcast %cst_5 : f32 to vector<8x128xf32>
    %17 = arith.select %15, %9, %16 : vector<8x128xi1>, vector<8x128xf32>
    %cst_6 = arith.constant dense<0.000000e+00> : vector<8xf32>
    %18 = vector.multi_reduction <add>, %17, %cst_6 [1] : vector<8x128xf32> to vector<8xf32>
    %19 = vector.shape_cast %18 : vector<8xf32> to vector<8x1xf32>
    %c32_i32 = arith.constant 32 : i32
    %20 = vector.broadcast %c32_i32 : i32 to vector<8x128xi32>
    %21 = arith.cmpi slt, %5, %20 : vector<8x128xi32>
    %cst_7 = arith.constant 0.000000e+00 : f32
    %22 = vector.broadcast %cst_7 : f32 to vector<8x128xf32>
    %23 = arith.select %21, %9, %22 : vector<8x128xi1>, vector<8x128xf32>
    %cst_8 = arith.constant dense<0.000000e+00> : vector<8xf32>
    %24 = vector.multi_reduction <add>, %23, %cst_8 [1] : vector<8x128xf32> to vector<8xf32>
    %25 = vector.shape_cast %24 : vector<8xf32> to vector<8x1xf32>
    %26 = arith.subf %13, %19 : vector<8x1xf32>
    %cst_9 = arith.constant 3.125000e-02 : f32
    %27 = vector.broadcast %cst_9 : f32 to vector<8x1xf32>
    %28 = arith.mulf %25, %27 : vector<8x1xf32>
    %29 = arith.subf %13, %28 : vector<8x1xf32>
    %cst_10 = arith.constant 0.899999976 : f32
    %30 = vector.broadcast %cst_10 : f32 to vector<8x1xf32>
    %31 = arith.mulf %30, %26 : vector<8x1xf32>
    %cst_11 = arith.constant 1.000000e-01 : f32
    %32 = vector.broadcast %cst_11 : f32 to vector<8x1xf32>
    %33 = arith.mulf %32, %29 : vector<8x1xf32>
    %34 = arith.addf %31, %33 : vector<8x1xf32>
    %cst_12 = arith.constant 0.000000e+00 : f32
    %35 = vector.broadcast %cst_12 : f32 to vector<8x1xf32>
    %36 = arith.subf %35, %34 : vector<8x1xf32>
    %37 = math.exp %36 : vector<8x1xf32>
    %cst_13 = arith.constant 1.000000e+00 : f32
    %38 = vector.broadcast %cst_13 : f32 to vector<8x1xf32>
    %39 = arith.subf %38, %37 : vector<8x1xf32>
    %40 = arith.mulf %39, %39 : vector<8x1xf32>
    %cst_14 = arith.constant 1.000000e+00 : f32
    %41 = vector.broadcast %cst_14 : f32 to vector<8x1xf32>
    %42 = arith.mulf %41, %40 : vector<8x1xf32>
    %43 = arith.mulf %42, %34 : vector<8x1xf32>
    %c1_i32 = arith.constant 1 : i32
    %44 = arith.muli %arg0, %c1_i32 : i32
    %45 = arith.addi %44, %arg1 : i32
    %c8_i32 = arith.constant 8 : i32
    %46 = arith.muli %45, %c8_i32 : i32
    %47 = tpu.iota {dimensions = array<i32: 0>} : vector<8x1xi32>
    %48 = vector.broadcast %46 : i32 to vector<8x1xi32>
    %49 = arith.addi %48, %47 : vector<8x1xi32>
    %c8_i32_15 = arith.constant 8 : i32
    %50 = vector.broadcast %c8_i32_15 : i32 to vector<8x1xi32>
    %51 = arith.cmpi slt, %49, %50 : vector<8x1xi32>
    %cst_16 = arith.constant 0.000000e+00 : f32
    %52 = vector.broadcast %cst_16 : f32 to vector<8x1xf32>
    %53 = arith.select %51, %43, %52 : vector<8x1xi1>, vector<8x1xf32>
    %c0_17 = arith.constant 0 : index
    %c0_18 = arith.constant 0 : index
    %54 = vector.load %arg4[%c0_17, %c0_18] : memref<8x128xf32, #tpu.memory_space<vmem>>, vector<8x128xf32>
    %55 = vector.shape_cast %53 : vector<8x1xf32> to vector<1x8x1xf32>
    %cst_19 = arith.constant dense<0.000000e+00> : vector<1xf32>
    %56 = vector.multi_reduction <add>, %55, %cst_19 [1, 2] : vector<1x8x1xf32> to vector<1xf32>
    %57 = vector.shape_cast %56 : vector<1xf32> to vector<1x1x1xf32>
    %58 = vector.extract %57[0, 0, 0] : f32 from vector<1x1x1xf32>
    %59 = vector.broadcast %58 : f32 to vector<8x128xf32>
    %60 = arith.addf %54, %59 : vector<8x128xf32>
    %c0_20 = arith.constant 0 : index
    %c0_21 = arith.constant 0 : index
    %61 = vector.load %arg4[%c0_20, %c0_21] : memref<8x128xf32, #tpu.memory_space<vmem>>, vector<8x128xf32>
    tpu.vector_store %arg4[%c0_20, %c0_21], %60 {strides = array<i32>} : memref<8x128xf32, #tpu.memory_space<vmem>>, vector<8x128xf32>,
    return
  }
  func.func @transform_0(%arg0: i32, %arg1: i32) -> (i32, i32) {
    %c1_i32 = arith.constant 1 : i32
    %0 = arith.muli %arg0, %c1_i32 : i32
    %1 = arith.addi %0, %arg1 : i32
    %c0_i32 = arith.constant 0 : i32
    %c0_i32_0 = arith.constant 0 : i32
    return %1, %c0_i32 : i32, i32
  }
  func.func @transform_1(%arg0: i32, %arg1: i32) -> (i32, i32) {
    %c1_i32 = arith.constant 1 : i32
    %0 = arith.muli %arg0, %c1_i32 : i32
    %1 = arith.addi %0, %arg1 : i32
    %c0_i32 = arith.constant 0 : i32
    %c0_i32_0 = arith.constant 0 : i32
    return %1, %c0_i32 : i32, i32
  }
  func.func @transform_2(%arg0: i32, %arg1: i32) -> (i32, i32) {
    %c0_i32 = arith.constant 0 : i32
    %c0_i32_0 = arith.constant 0 : i32
    return %arg0, %c0_i32 : i32, i32
  }
}

</mosaic_0001>

<llo_original>
// kernel: tpu_custom_call.1
$region0: #{tpu_custom_call.1}
  #allocation0 [shape = 'u32[]', space=smem, size = 0x4, offset = 0x4, fixed_abs, tag = 'smem constant byte address 0x4 - core index']
  #allocation1 [shape = 'u32[144,128]{1,0:T(1,128)}', space=vmem, size = 0x12000, scoped, tag = 'internal scratch']
  %s0 = inlined_call_operand.vmem [shape: f32[16,128], index: 0, kind: input, shape index: {}]
  %s1 = inlined_call_operand.vmem [shape: s32[16,1], index: 1, kind: input, shape index: {}]
  %s2 = inlined_call_operand.hbm [shape: f32[16,128], index: 2, kind: output, shape index: {}]
  %s3 = sld [smem:[#allocation0]]
  $region45: #{tpu_custom_call.1} parent=0
    _
  %s5 = ssub.s32 1, %s3
  %s6 = scalar_select 0, %s5, %s3
  $region1: #{tpu_custom_call.1} parent=0
    #allocation2 [shape = 'u8[8192]{0}', space=vmem, size = 0x2000, scoped, tag = 'output window, operand 0']
    #allocation3 [shape = 's32[2]{0}', space=sflag, size = 0x8, scoped, tag = 'scoped memory for tpu_custom_call.1']
    %7 = vsyncpa [#allocation3], 0
    %s8 = scalar_lea.sflag [#allocation3], 1
    %9 = vsyncpa %s8, 0
    loop: start=0, step=1, limit=4
    $region2: #{tpu_custom_call.1} parent=1 // loop_pre_header
      _
    $region3: #{tpu_custom_call.1} parent=1 // loop_header
      %s11 = sphi 0, %s15
      %p12 = scmp.ge.s32.totalorder %s11, 4
      %s18 = sphi 0, %s30
      %s19 = sphi 0, %s26
      %s20 = sphi 0, %s18
      %s21 = sphi 0, %s19
      %s22 = sphi 0, %s20
      %s23 = sphi 0, %s21
      %s35 = sphi 0, %s37
      %s38 = sphi 0, %s35
      %s39 = sphi 0, %s38
      %s55 = sphi 0, %s39
      %s63 = sphi 0, %s65
      %s66 = sphi 0, %s63
      %s67 = sphi 0, %s66
      %s83 = sphi 0, %s67
      %s89 = sphi 0, %s91
      %s92 = sphi 0, %s89
      %s93 = sphi 0, %s92
      %s109 = sphi 0, %s93
    $region4: #{tpu_custom_call.1} parent=1 // loop_header_branch
      %14 = sbr.rel (%p12) target = $region8
    $region5: #{tpu_custom_call.1} parent=1 // loop_body
      %s16 = ssub.s32 %s11, 1
      %s17 = ssub.s32 %s11, 2
      %s24 = sadd.s32 1, %s19
      %p25 = scmp.ge.s32.totalorder %s24, 1
      %s26 = scalar_select %p25, 0, %s24
      %s27 = sadd.s32 1, %s18
      %s28 = scalar_select %p25, %s27, %s18
      %p29 = scmp.ge.s32.totalorder %s28, 2
      %s30 = scalar_select %p29, 0, %s28
      %s31 = sadd.s32 %s18, %s19
      %s32 = sadd.s32 %s30, %s26
      %s33 = ssub.s32 %s31, %s32
      %p34 = scmp.eq.s32.totalorder %s33, 0
      %s36 = sadd.s32 %s35, 1
      %s37 = scalar_select %p34, %s35, %s36
      %p40 = pneg %p34
      %p41 = scmp.eq.s32.totalorder %s11, 1
      %p42 = por %p40, %p41
      %p43 = scmp.ne.s32.totalorder %s35, %s38
      %p44 = scmp.eq.s32.totalorder %s11, 0
      %p45 = por %p43, %p44
      %p46 = scmp.ne.s32.totalorder %s35, %s38
      %p47 = scmp.eq.s32.totalorder %s16, 1
      %p48 = por %p46, %p47
      %p49 = scmp.ne.s32.totalorder %s38, %s39
      %p50 = scmp.eq.s32.totalorder %s16, 0
      %p51 = por %p49, %p50
      %p52 = scmp.ne.s32.totalorder %s38, %s39
      %p53 = scmp.eq.s32.totalorder %s17, 1
      %p54 = por %p52, %p53
      %p56 = scmp.ne.s32.totalorder %s39, %s55
      %p57 = scmp.eq.s32.totalorder %s17, 0
      %p58 = por %p56, %p57
      %s59 = sadd.s32 %s18, %s19
      %s60 = sadd.s32 %s30, %s26
      %s61 = ssub.s32 %s59, %s60
      %p62 = scmp.eq.s32.totalorder %s61, 0
      %s64 = sadd.s32 %s63, 1
      %s65 = scalar_select %p62, %s63, %s64
      %p68 = pneg %p62
      %p69 = scmp.eq.s32.totalorder %s11, 1
      %p70 = por %p68, %p69
      %p71 = scmp.ne.s32.totalorder %s63, %s66
      %p72 = scmp.eq.s32.totalorder %s11, 0
      %p73 = por %p71, %p72
      %p74 = scmp.ne.s32.totalorder %s63, %s66
      %p75 = scmp.eq.s32.totalorder %s16, 1
      %p76 = por %p74, %p75
      %p77 = scmp.ne.s32.totalorder %s66, %s67
      %p78 = scmp.eq.s32.totalorder %s16, 0
      %p79 = por %p77, %p78
      %p80 = scmp.ne.s32.totalorder %s66, %s67
      %p81 = scmp.eq.s32.totalorder %s17, 1
      %p82 = por %p80, %p81
      %p84 = scmp.ne.s32.totalorder %s67, %s83
      %p85 = scmp.eq.s32.totalorder %s17, 0
      %p86 = por %p84, %p85
      %s87 = ssub.s32 %s18, %s30
      %p88 = scmp.eq.s32.totalorder %s87, 0
      %s90 = sadd.s32 %s89, 1
      %s91 = scalar_select %p88, %s89, %s90
      %p94 = pneg %p88
      %p95 = scmp.eq.s32.totalorder %s11, 1
      %p96 = por %p94, %p95
      %p97 = scmp.ne.s32.totalorder %s89, %s92
      %p98 = scmp.eq.s32.totalorder %s11, 0
      %p99 = por %p97, %p98
      %p100 = scmp.ne.s32.totalorder %s89, %s92
      %p101 = scmp.eq.s32.totalorder %s16, 1
      %p102 = por %p100, %p101
      %p103 = scmp.ne.s32.totalorder %s92, %s93
      %p104 = scmp.eq.s32.totalorder %s16, 0
      %p105 = por %p103, %p104
      %p106 = scmp.ne.s32.totalorder %s92, %s93
      %p107 = scmp.eq.s32.totalorder %s17, 1
      %p108 = por %p106, %p107
      %p110 = scmp.ne.s32.totalorder %s93, %s109
      %p111 = scmp.eq.s32.totalorder %s17, 0
      %p112 = por %p110, %p111
      %p113 = scmp.le.s32.totalorder 1, %s11
      %p114 = scmp.lt.s32.totalorder %s11, 3
      %p115 = pnand %p113, %p114
      %p116 = pneg %p115
      // Predicated region
      $region9: #{tpu_custom_call.1} parent=5 // pred_check
        _
      $region10: #{tpu_custom_call.1} parent=5 // pred_check_branch
        %118 = sbr.rel (%p115) target = $region12
      $region11: #{tpu_custom_call.1} parent=5 // pred_region
        %s119 = ssub.s32 %s11, 1
      $region12: #{tpu_custom_call.1} parent=5 // pred_fallthru
        _
      %p120 = scmp.lt.s32.totalorder %s11, 2
      // Predicated region
      $region13: #{tpu_custom_call.1} parent=5 // pred_check
        %p121 = pneg %p120
      $region14: #{tpu_custom_call.1} parent=5 // pred_check_branch
        %123 = sbr.rel (%p121) target = $region16
      $region15: #{tpu_custom_call.1} parent=5 // pred_region
        // Predicated region
        $region17: #{tpu_custom_call.1} parent=15 // pred_check
          %p124 = pneg %p45
        $region18: #{tpu_custom_call.1} parent=15 // pred_check_branch
          %126 = sbr.rel (%p124) target = $region20
        $region19: #{tpu_custom_call.1} parent=15 // pred_region
          %s127 = sadd.s32 %s18, %s19
          %p128 = scmp.lt.s32.totalorder %s127, 1
          %s129 = scalar_select %p128, %s127, 1
          %s130 = smul.addr %s129, 8
          %s131 = scalar_lea.vmem %s0, %s130
          %s132 = sadd.s32 %s18, %s19
        $region20: #{tpu_custom_call.1} parent=15 // pred_fallthru
          _
        // Predicated region
        $region21: #{tpu_custom_call.1} parent=15 // pred_check
          %p133 = pneg %p73
        $region22: #{tpu_custom_call.1} parent=15 // pred_check_branch
          %135 = sbr.rel (%p133) target = $region24
        $region23: #{tpu_custom_call.1} parent=15 // pred_region
          %s136 = sadd.s32 %s18, %s19
          %p137 = scmp.lt.s32.totalorder %s136, 1
          %s138 = scalar_select %p137, %s136, 1
          %s139 = smul.addr %s138, 8
          %s140 = scalar_lea.vmem %s1, %s139
          %s141 = sadd.s32 %s18, %s19
        $region24: #{tpu_custom_call.1} parent=15 // pred_fallthru
          _
      $region16: #{tpu_custom_call.1} parent=5 // pred_fallthru
        _
      %p142 = scmp.le.s32.totalorder 1, %s11
      %p143 = scmp.lt.s32.totalorder %s11, 3
      %p144 = pnand %p142, %p143
      %p145 = pneg %p144
      // Predicated region
      $region25: #{tpu_custom_call.1} parent=5 // pred_check
        _
      $region26: #{tpu_custom_call.1} parent=5 // pred_check_branch
        %147 = sbr.rel (%p144) target = $region28
      $region27: #{tpu_custom_call.1} parent=5 // pred_region
        %s148 = ssub.s32 %s11, 1
        %s149 = sadd.s32 %s20, %s21
        %p150 = scmp.lt.s32.totalorder %s149, 1
        %s151 = scalar_select %p150, %s149, 1
        %s152 = smul.addr %s151, 8
        %s153 = scalar_lea.vmem %s0, %s152
        %p154 = pneg %p51
        %p155 = pneg %p48
        %s156 = sadd.s32 %s20, %s21
        %p157 = scmp.lt.s32.totalorder %s156, 1
        %s158 = scalar_select %p157, %s156, 1
        %s159 = smul.addr %s158, 8
        %s160 = scalar_lea.vmem %s1, %s159
        %p161 = pneg %p79
        %p162 = pneg %p76
        %p163 = pneg %p105
        %p164 = pneg %p102
        %s165 = sand.u32 %s92, 1
        %s166 = scalar_lea.sflag [#allocation3], %s165
        %s167 = sand.u32 %s92, 1
        %s168 = smul.addr %s167, 8
        %s169 = scalar_lea.vmem [#allocation2], %s168
        %s170 = sadd.s32 %s20, %s21
        %p171 = scmp.lt.s32.totalorder %s170, 1
        %s172 = scalar_select %p171, %s170, 1
        %s173 = smul.addr %s172, 8
        %s174 = scalar_lea.vmem %s0, %s173
        %s175 = sadd.s32 %s20, %s21
        %s176 = sadd.s32 %s20, %s21
        %p177 = scmp.lt.s32.totalorder %s176, 1
        %s178 = scalar_select %p177, %s176, 1
        %s179 = smul.addr %s178, 8
        %s180 = scalar_lea.vmem %s1, %s179
        %s181 = sadd.s32 %s20, %s21
        %p182 = scmp.eq.s32.totalorder %s21, 0
        // Predicated region
        $region29: #{tpu_custom_call.1} parent=27 // pred_check
          %p183 = pneg %p182
        $region30: #{tpu_custom_call.1} parent=27 // pred_check_branch
          %185 = sbr.rel (%p183) target = $region32
        $region31: #{tpu_custom_call.1} parent=27 // pred_region
          %186 = vst [vmem:[%s169] sm:$0xff] 0.0
        $region32: #{tpu_custom_call.1} parent=27 // pred_fallthru
          _
        %v187 = vld [vmem:[%s174] sm:$0xff]
        %v188 = vld [vmem:[%s180] sm:$0xff]
        %v189 = vlaneseq
        %v190 = vand.u32 %v189, 127
        %191 = vmax.xlane.f32.xlu0 %v187
        %v192 = vpop.xlane.xlu0 %191
        %v193 = vsub.f32 %v187, %v192
        %v194 = vmul.f32 %v193, 1.442695
        %v195 = vpow.pop %v194
        %196 = vadd.xlane.f32.xlu0 %v195
        %v197 = vpop.xlane.xlu0 %196
        %v198 = vlog2.pop %v197
        %v199 = vmul.f32 %v198, 0.6931472
        %200 = vset.pattern.permute.xlu0 0
        %201 = vperm.xlu0 %200, %v188
        %v202 = vpop.permute.xlu0 %201
        %vm203 = vcmp.eq.s32.totalorder %v190, %v202
        %v204 = vsel %vm203, %v193, 0.0
        %205 = vadd.xlane.f32.xlu0 %v204
        %v206 = vpop.xlane.xlu0 %205
        %vm207 = vcmp.lt.s32.totalorder %v190, 32
        %v208 = vsel %vm207, %v193, 0.0
        %209 = vadd.xlane.f32.xlu0 %v208
        %v210 = vpop.xlane.xlu0 %209
        %v211 = vsub.f32 %v199, %v206
        %v212 = vmul.f32 %v210, 0.03125
        %v213 = vsub.f32 %v199, %v212
        %v214 = vmul.f32 %v211, 0.9
        %v215 = vmul.f32 %v213, 0.1
        %v216 = vadd.f32 %v214, %v215
        %v217 = vsub.f32 0.0, %v216
        %v218 = vmul.f32 %v217, 1.442695
        %v219 = vpow.pop %v218
        %v220 = vsub.f32 1.0, %v219
        %v221 = vmul.f32 %v220, %v220
        %v222 = vmul.f32 %v221, %v216
        %s223 = sadd.s32 %s20, %s21
        %s224 = smul.u32 %s223, 8
        %v225 = vlaneseq
        %v226 = vshrl.u32 %v225, 7
        %v227 = vstv %s224
        %v228 = vadd.s32 %v227, %v226
        %vm229 = vcmp.lt.s32.totalorder %v228, 8
        %v230 = vsel %vm229, %v222, 0.0
        %v231 = vld [vmem:[%s169] sm:$0xff]
        %vm232 = vcmask 7168
        %v233 = vsel %vm232, %v230, 0.0
        %234 = vadd.xlane.f32.xlu0 %v233
        %v235 = vpop.xlane.xlu0 %234
        %v236 = vrot.slane %v235, 4
        %v237 = vadd.f32 %v235, %v236
        %v238 = vrot.slane %v237, 2
        %v239 = vadd.f32 %v237, %v238
        %v240 = vrot.slane %v239, 1
        %v241 = vadd.f32 %v239, %v240
        %s242 = vtos %v241
        %v243 = vstv %s242
        %v244 = vadd.f32 %v231, %v243
        %245 = vst [vmem:[%s169] sm:$0xff] %v244
        %s246 = sand.u32 %s92, 1
        %s247 = scalar_lea.sflag [#allocation3], %s246
        %s248 = sand.u32 %s92, 1
        %s249 = smul.addr %s248, 8
        %s250 = scalar_lea.vmem [#allocation2], %s249
        // Predicated region
        $region33: #{tpu_custom_call.1} parent=27 // pred_check
          %p251 = pneg %p102
        $region34: #{tpu_custom_call.1} parent=27 // pred_check_branch
          %253 = sbr.rel (%p251) target = $region36
        $region35: #{tpu_custom_call.1} parent=27 // pred_region
          %s255 = ssub.s32 128, 128
          %256 = vsyncadd %s247, %s255
          %s257 = smul.addr %s20, 128
          %s258 = scalar_lea.hbm %s2, %s257
          %s260 = sshll.u32 %s250, 4
          %s261 = int_to_ptr.vmem [resolvable:$true] %s260
          %263 = dma.vmem_to_hbm [thread:$0]  %s261, 128, %s258, %s247
        $region36: #{tpu_custom_call.1} parent=27 // pred_fallthru
          _
      $region28: #{tpu_custom_call.1} parent=5 // pred_fallthru
        _
      %p264 = scmp.le.s32.totalorder 2, %s11
      // Predicated region
      $region37: #{tpu_custom_call.1} parent=5 // pred_check
        %p265 = pneg %p264
      $region38: #{tpu_custom_call.1} parent=5 // pred_check_branch
        %267 = sbr.rel (%p265) target = $region40
      $region39: #{tpu_custom_call.1} parent=5 // pred_region
        %s268 = ssub.s32 %s11, 2
        // Predicated region
        $region41: #{tpu_custom_call.1} parent=39 // pred_check
          %p269 = pneg %p108
        $region42: #{tpu_custom_call.1} parent=39 // pred_check_branch
          %271 = sbr.rel (%p269) target = $region44
        $region43: #{tpu_custom_call.1} parent=39 // pred_region
          %s272 = sand.u32 %s93, 1
          %s273 = scalar_lea.sflag [#allocation3], %s272
          %s274 = sand.u32 %s93, 1
          %s275 = smul.addr %s274, 8
          %s276 = scalar_lea.vmem [#allocation2], %s275
          %277 = dma.done %s273, 128
        $region44: #{tpu_custom_call.1} parent=39 // pred_fallthru
          _
      $region40: #{tpu_custom_call.1} parent=5 // pred_fallthru
        _
    $region6: #{tpu_custom_call.1} parent=1 // loop_footer
      %s15 = sadd.s32 1, %s11
    $region7: #{tpu_custom_call.1} parent=1 // loop_footer_branch
      %10 = sbr.rel target = $region3
    $region8: #{tpu_custom_call.1} parent=1 // loop_exit
      _
    %278 = vsyncpa [#allocation3], 1
    %s279 = scalar_lea.sflag [#allocation3], 1
    %280 = vsyncpa %s279, 1

</llo_original>
